<compile_context>
chip_gen: v7x
topology: tpu7x:2x2x1
jax: 0.10.0
libtpu: 0.0.40
codegen_flags: <defaults>
</compile_context>

<pallas_src>
import functools
import math

import jax
import jax.numpy as jnp
from jax.experimental import pallas as pl
from jax.experimental.pallas import tpu as pltpu


def gcn_kernel(x_ref, adj_ref, w1_ref, b1_ref, s2_ref, b2_ref, out_ref, *, nclass):
    # ---- gc1 (reassociated): h = relu((adj @ x) @ W1 + b1) ----
    ax = jnp.dot(adj_ref[...], x_ref[...], preferred_element_type=jnp.float32)
    h = jnp.dot(ax, w1_ref[...], preferred_element_type=jnp.float32) + b1_ref[...]
    h = jnp.maximum(h, 0.0)

    # ---- dropout: identity in eval mode ----
    # TODO(synk): training-mode dropout (pltpu.prng_random_bits mask) not implemented; eval semantics used.

    # ---- gc2, algebraically simplified ----
    # ones(100,100) @ W2 has identical rows equal to colsum(W2) (= s2, precomputed in wrapper),
    # hence h @ (ones @ W2) == sum(h, axis=1, keepdims=True) * s2.
    # Padded columns of h are exactly zero, so the row-sum over the padded width is exact.
    row_sum = jnp.sum(h, axis=1, keepdims=True)
    logits = row_sum * s2_ref[...] + b2_ref[...]

    # Mask padded class lanes to -inf so they do not affect the log_softmax statistics.
    col = jax.lax.broadcasted_iota(jnp.int32, logits.shape, 1)
    logits = jnp.where(col < nclass, logits, jnp.float32(-jnp.inf))

    # ---- log_softmax over dim=1 (class axis), max-shifted for stability ----
    m = jnp.max(logits, axis=1, keepdims=True)
    shifted = logits - m
    lse = jnp.log(jnp.sum(jnp.exp(shifted), axis=1, keepdims=True))
    out_ref[...] = shifted - lse


def _round_up(v, m=128):
    return ((v + m - 1) // m) * m


def gcn_forward(x, adj, w1, b1, w2, b2):
    N, nfeat = x.shape
    nhid, nclass = w2.shape
    assert adj.shape == (N, N)
    assert w1.shape == (nfeat, nhid)
    # Module quirk: gc2 multiplies torch.ones(100, 100) by W2, which requires nhid == 100.
    assert nhid == 100, "GCN.forward only works with nhid == 100 (torch.ones(100,100) @ W2)"

    NP, FP, HP, CP = _round_up(N), _round_up(nfeat), _round_up(nhid), _round_up(nclass)

    f32 = jnp.float32
    x_p = jnp.zeros((NP, FP), f32).at[:N, :nfeat].set(x.astype(f32))
    adj_p = jnp.zeros((NP, NP), f32).at[:N, :N].set(adj.astype(f32))
    w1_p = jnp.zeros((FP, HP), f32).at[:nfeat, :nhid].set(w1.astype(f32))
    b1_p = jnp.zeros((1, HP), f32).at[:, :nhid].set(b1.reshape(1, -1).astype(f32))

    # s2 = column sums of W2 (== any row of ones(100,100) @ W2). Depends only on params.
    s2 = jnp.sum(w2.astype(f32), axis=0, keepdims=True)  # (1, nclass)
    s2_p = jnp.zeros((1, CP), f32).at[:, :nclass].set(s2)
    b2_p = jnp.zeros((1, CP), f32).at[:, :nclass].set(b2.reshape(1, -1).astype(f32))

    vmem = pl.BlockSpec(memory_space=pltpu.MemorySpace.VMEM)
    out_p = pl.pallas_call(
        functools.partial(gcn_kernel, nclass=nclass),
        out_shape=jax.ShapeDtypeStruct((NP, CP), jnp.float32),
        in_specs=[vmem] * 6,
        out_specs=vmem,
    )(x_p, adj_p, w1_p, b1_p, s2_p, b2_p)

    return out_p[:N, :nclass]


def init_gcn_params(key, nfeat, nhid, nclass):
    """Deterministic init mimicking GraphConvolution.reset_parameters (U(-stdv, stdv))."""
    k1, k2, k3, k4 = jax.random.split(key, 4)
    stdv1 = 1.0 / math.sqrt(nhid)
    stdv2 = 1.0 / math.sqrt(nclass)
    w1 = jax.random.uniform(k1, (nfeat, nhid), jnp.float32, -stdv1, stdv1)
    b1 = jax.random.uniform(k2, (nhid,), jnp.float32, -stdv1, stdv1)
    w2 = jax.random.uniform(k3, (nhid, nclass), jnp.float32, -stdv2, stdv2)
    b2 = jax.random.uniform(k4, (nclass,), jnp.float32, -stdv2, stdv2)
    return w1, b1, w2, b2


if __name__ == "__main__":
    N = 100       # number of graph nodes (adj is N x N)
    nfeat = 64
    nhid = 100    # forced to 100 by torch.ones(100, 100) in the module's forward
    nclass = 10

    key = jax.random.PRNGKey(0)
    kx, kadj, kparam = jax.random.split(key, 3)

    x = jax.random.normal(kx, (N, nfeat), jnp.float32)
    # symmetric row-normalized-ish adjacency (dense)
    a = (jax.random.uniform(kadj, (N, N)) < 0.1).astype(jnp.float32)
    a = a + a.T + jnp.eye(N, dtype=jnp.float32)
    adj = a / jnp.sum(a, axis=1, keepdims=True)

    w1, b1, w2, b2 = init_gcn_params(kparam, nfeat, nhid, nclass)

    out = gcn_forward(x, adj, w1, b1, w2, b2)
    out = jax.block_until_ready(out)
    assert out.shape == (N, nclass)

    # sanity: log_softmax rows should sum (in prob space) to ~1
    row_sums = jnp.sum(jnp.exp(out), axis=1)
    assert bool(jnp.all(jnp.abs(row_sums - 1.0) < 1e-4))

    # reference check against the literal (un-simplified) forward in plain JAX
    h_ref = jnp.maximum(adj @ (x @ w1) + b1, 0.0)
    support2 = jnp.ones((100, 100), jnp.float32) @ w2
    logits_ref = h_ref @ support2 + b2
    ref = jax.nn.log_softmax(logits_ref, axis=1)
    assert bool(jnp.all(jnp.abs(out - ref) < 5e-3))

    print("KERNEL_OK")
</pallas_src>

<mosaic_0001>
module attributes {stable_mosaic.version = 11 : i64} {
  func.func @gcn_kernel(%arg0: memref<128x128xf32, #tpu.memory_space<vmem>>, %arg1: memref<128x128xf32, #tpu.memory_space<vmem>>, %arg2: memref<128x128xf32, #tpu.memory_space<vmem>>, %arg3: memref<1x128xf32, #tpu.memory_space<vmem>>, %arg4: memref<1x128xf32, #tpu.memory_space<vmem>>, %arg5: memref<1x128xf32, #tpu.memory_space<vmem>>, %arg6: memref<128x128xf32, #tpu.memory_space<vmem>>) attributes {dimension_semantics = [], scalar_prefetch = 0 : i64, scratch_operands = 0 : i64, tpu.core_type = #tpu.core_type<tc>} {
    %c0 = arith.constant 0 : index
    %c0_0 = arith.constant 0 : index
    %0 = vector.load %arg1[%c0, %c0_0] : memref<128x128xf32, #tpu.memory_space<vmem>>, vector<128x128xf32>
    %c0_1 = arith.constant 0 : index
    %c0_2 = arith.constant 0 : index
    %1 = vector.load %arg0[%c0_1, %c0_2] : memref<128x128xf32, #tpu.memory_space<vmem>>, vector<128x128xf32>
    %cst = arith.constant dense<0.000000e+00> : vector<128x128xf32>
    %2 = tpu.matmul %0, %1, %cst {dimension_numbers = #tpu.dot_dimension_numbers<[1], [0], [0], [1], [0, 0, 1, 1], [], []>} : vector<128x128xf32>, vector<128x128xf32>, vector<128x128xf32> -> vector<128x128xf32>
    %c0_3 = arith.constant 0 : index
    %c0_4 = arith.constant 0 : index
    %3 = vector.load %arg2[%c0_3, %c0_4] : memref<128x128xf32, #tpu.memory_space<vmem>>, vector<128x128xf32>
    %cst_5 = arith.constant dense<0.000000e+00> : vector<128x128xf32>
    %4 = tpu.matmul %2, %3, %cst_5 {dimension_numbers = #tpu.dot_dimension_numbers<[1], [0], [0], [1], [0, 0, 1, 1], [], []>} : vector<128x128xf32>, vector<128x128xf32>, vector<128x128xf32> -> vector<128x128xf32>
    %c0_6 = arith.constant 0 : index
    %c0_7 = arith.constant 0 : index
    %5 = vector.load %arg3[%c0_6, %c0_7] : memref<1x128xf32, #tpu.memory_space<vmem>>, vector<1x128xf32>
    %6 = vector.broadcast %5 : vector<1x128xf32> to vector<128x128xf32>
    %7 = arith.addf %4, %6 : vector<128x128xf32>
    %cst_8 = arith.constant 0.000000e+00 : f32
    %8 = vector.broadcast %cst_8 : f32 to vector<128x128xf32>
    %9 = arith.maximumf %7, %8 : vector<128x128xf32>
    %cst_9 = arith.constant dense<0.000000e+00> : vector<128xf32>
    %10 = vector.multi_reduction <add>, %9, %cst_9 [1] : vector<128x128xf32> to vector<128xf32>
    %11 = vector.shape_cast %10 : vector<128xf32> to vector<128x1xf32>
    %c0_10 = arith.constant 0 : index
    %c0_11 = arith.constant 0 : index
    %12 = vector.load %arg4[%c0_10, %c0_11] : memref<1x128xf32, #tpu.memory_space<vmem>>, vector<1x128xf32>
    %13 = vector.broadcast %11 : vector<128x1xf32> to vector<128x128xf32>
    %14 = vector.broadcast %12 : vector<1x128xf32> to vector<128x128xf32>
    %15 = arith.mulf %13, %14 : vector<128x128xf32>
    %c0_12 = arith.constant 0 : index
    %c0_13 = arith.constant 0 : index
    %16 = vector.load %arg5[%c0_12, %c0_13] : memref<1x128xf32, #tpu.memory_space<vmem>>, vector<1x128xf32>
    %17 = vector.broadcast %16 : vector<1x128xf32> to vector<128x128xf32>
    %18 = arith.addf %15, %17 : vector<128x128xf32>
    %19 = tpu.iota {dimensions = array<i32: 1>} : vector<128x128xi32>
    %c10_i32 = arith.constant 10 : i32
    %20 = vector.broadcast %c10_i32 : i32 to vector<128x128xi32>
    %21 = arith.cmpi slt, %19, %20 : vector<128x128xi32>
    %cst_14 = arith.constant 0xFF800000 : f32
    %22 = vector.broadcast %cst_14 : f32 to vector<128x128xf32>
    %23 = arith.select %21, %18, %22 : vector<128x128xi1>, vector<128x128xf32>
    %cst_15 = arith.constant dense<0xFF800000> : vector<128xf32>
    %24 = vector.multi_reduction <maximumf>, %23, %cst_15 [1] : vector<128x128xf32> to vector<128xf32>
    %25 = vector.shape_cast %24 : vector<128xf32> to vector<128x1xf32>
    %26 = vector.broadcast %25 : vector<128x1xf32> to vector<128x128xf32>
    %27 = arith.subf %23, %26 : vector<128x128xf32>
    %28 = math.exp %27 : vector<128x128xf32>
    %cst_16 = arith.constant dense<0.000000e+00> : vector<128xf32>
    %29 = vector.multi_reduction <add>, %28, %cst_16 [1] : vector<128x128xf32> to vector<128xf32>
    %30 = vector.shape_cast %29 : vector<128xf32> to vector<128x1xf32>
    %31 = math.log %30 : vector<128x1xf32>
    %32 = vector.broadcast %31 : vector<128x1xf32> to vector<128x128xf32>
    %33 = arith.subf %27, %32 : vector<128x128xf32>
    %c0_17 = arith.constant 0 : index
    %c0_18 = arith.constant 0 : index
    %34 = vector.load %arg6[%c0_17, %c0_18] : memref<128x128xf32, #tpu.memory_space<vmem>>, vector<128x128xf32>
    tpu.vector_store %arg6[%c0_17, %c0_18], %33 {strides = array<i32>} : memref<128x128xf32, #tpu.memory_space<vmem>>, vector<128x128xf32>,
    return
  }
}

</mosaic_0001>

<llo_original>
// kernel: tpu_custom_call.1
$region0: #{tpu_custom_call.1}
  #allocation0 [shape = 'u32[]', space=smem, size = 0x4, offset = 0x4, fixed_abs, tag = 'smem constant byte address 0x4 - core index']
  #allocation1 [shape = 'u32[144,128]{1,0:T(1,128)}', space=vmem, size = 0x12000, scoped, tag = 'internal scratch']
  %s0 = inlined_call_operand.hbm [shape: f32[128,128], index: 0, kind: input, shape index: {}]
  %s1 = inlined_call_operand.hbm [shape: f32[128,128], index: 1, kind: input, shape index: {}]
  %s2 = inlined_call_operand.hbm [shape: f32[128,128], index: 2, kind: input, shape index: {}]
  %s3 = inlined_call_operand.vmem [shape: f32[1,128], index: 3, kind: input, shape index: {}]
  %s4 = inlined_call_operand.vmem [shape: f32[1,128], index: 4, kind: input, shape index: {}]
  %s5 = inlined_call_operand.vmem [shape: f32[1,128], index: 5, kind: input, shape index: {}]
  %s6 = inlined_call_operand.hbm [shape: f32[128,128], index: 6, kind: output, shape index: {}]
  %s7 = sld [smem:[#allocation0]]
  $region46: #{tpu_custom_call.1} parent=0
    _
  %s9 = ssub.s32 1, %s7
  %s10 = scalar_select 0, %s9, %s7
  $region1: #{tpu_custom_call.1} parent=0
    #allocation2 [shape = 'u8[65536]{0}', space=vmem, size = 0x10000, scoped, tag = 'input window, operand 0, single buffered']
    #allocation3 [shape = 's32[1]{0}', space=sflag, size = 0x4, scoped, tag = 'scoped memory for tpu_custom_call.1']
    #allocation4 [shape = 's32[1]{0}', space=sflag, size = 0x4, scoped, tag = 'scoped memory for tpu_custom_call.1']
    #allocation5 [shape = 'u8[65536]{0}', space=vmem, size = 0x10000, scoped, tag = 'input window, operand 1, single buffered']
    #allocation6 [shape = 's32[1]{0}', space=sflag, size = 0x4, scoped, tag = 'scoped memory for tpu_custom_call.1']
    #allocation7 [shape = 'u8[65536]{0}', space=vmem, size = 0x10000, scoped, tag = 'input window, operand 2, single buffered']
    #allocation8 [shape = 'u8[65536]{0}', space=vmem, size = 0x10000, scoped, tag = 'output window, operand 0, single buffered']
    %11 = vsyncpa [#allocation3], 0
    %12 = vsyncpa [#allocation6], 0
    %13 = vsyncpa [#allocation4], 0
    // Predicated region
    $region2: #{tpu_custom_call.1} parent=1 // pred_check
      _
    $region3: #{tpu_custom_call.1} parent=1 // pred_check_branch
      %15 = sbr.rel (0) target = $region5
    $region4: #{tpu_custom_call.1} parent=1 // pred_region
      %s17 = ssub.s32 2048, 2048
      %18 = vsyncadd [#allocation3], %s17
      %s19 = sshll.u32 [#allocation2], 4
      %s20 = int_to_ptr.vmem [resolvable:$true] %s19
      %25 = dma.hbm_to_vmem [thread:$0]  %s0, 2048, %s20, [#allocation3], 128, 128, 8
    $region5: #{tpu_custom_call.1} parent=1 // pred_fallthru
      _
    // Predicated region
    $region6: #{tpu_custom_call.1} parent=1 // pred_check
      _
    $region7: #{tpu_custom_call.1} parent=1 // pred_check_branch
      %27 = sbr.rel (0) target = $region9
    $region8: #{tpu_custom_call.1} parent=1 // pred_region
      %s29 = ssub.s32 2048, 2048
      %30 = vsyncadd [#allocation6], %s29
      %s31 = sshll.u32 [#allocation5], 4
      %s32 = int_to_ptr.vmem [resolvable:$true] %s31
      %37 = dma.hbm_to_vmem [thread:$0]  %s1, 2048, %s32, [#allocation6], 128, 128, 8
    $region9: #{tpu_custom_call.1} parent=1 // pred_fallthru
      _
    // Predicated region
    $region10: #{tpu_custom_call.1} parent=1 // pred_check
      _
    $region11: #{tpu_custom_call.1} parent=1 // pred_check_branch
      %39 = sbr.rel (0) target = $region13
    $region12: #{tpu_custom_call.1} parent=1 // pred_region
      %s41 = ssub.s32 2048, 2048
      %42 = vsyncadd [#allocation6], %s41
      %s43 = sshll.u32 [#allocation7], 4
      %s44 = int_to_ptr.vmem [resolvable:$true] %s43
      %49 = dma.hbm_to_vmem [thread:$0]  %s2, 2048, %s44, [#allocation6], 128, 128, 8
    $region13: #{tpu_custom_call.1} parent=1 // pred_fallthru
      _
    // Predicated region
    $region14: #{tpu_custom_call.1} parent=1 // pred_check
      _
    $region15: #{tpu_custom_call.1} parent=1 // pred_check_branch
      %51 = sbr.rel (0) target = $region17
    $region16: #{tpu_custom_call.1} parent=1 // pred_region
      _
    $region17: #{tpu_custom_call.1} parent=1 // pred_fallthru
      _
    // Predicated region
    $region18: #{tpu_custom_call.1} parent=1 // pred_check
      _
    $region19: #{tpu_custom_call.1} parent=1 // pred_check_branch
      %53 = sbr.rel (0) target = $region21
    $region20: #{tpu_custom_call.1} parent=1 // pred_region
      _
    $region21: #{tpu_custom_call.1} parent=1 // pred_fallthru
      _
    // Predicated region
    $region22: #{tpu_custom_call.1} parent=1 // pred_check
      _
    $region23: #{tpu_custom_call.1} parent=1 // pred_check_branch
      %55 = sbr.rel (0) target = $region25
    $region24: #{tpu_custom_call.1} parent=1 // pred_region
      _
    $region25: #{tpu_custom_call.1} parent=1 // pred_fallthru
      _
    // Predicated region
    $region26: #{tpu_custom_call.1} parent=1 // pred_check
      _
    $region27: #{tpu_custom_call.1} parent=1 // pred_check_branch
      %57 = sbr.rel (0) target = $region29
    $region28: #{tpu_custom_call.1} parent=1 // pred_region
      %58 = dma.done [#allocation3], 2048
    $region29: #{tpu_custom_call.1} parent=1 // pred_fallthru
      _
    // Predicated region
    $region30: #{tpu_custom_call.1} parent=1 // pred_check
      _
    $region31: #{tpu_custom_call.1} parent=1 // pred_check_branch
      %60 = sbr.rel (0) target = $region33
    $region32: #{tpu_custom_call.1} parent=1 // pred_region
      %61 = dma.done [#allocation6], 2048
    $region33: #{tpu_custom_call.1} parent=1 // pred_fallthru
      _
    // Predicated region
    $region34: #{tpu_custom_call.1} parent=1 // pred_check
      _
    $region35: #{tpu_custom_call.1} parent=1 // pred_check_branch
      %63 = sbr.rel (0) target = $region37
    $region36: #{tpu_custom_call.1} parent=1 // pred_region
      %64 = dma.done [#allocation6], 2048
    $region37: #{tpu_custom_call.1} parent=1 // pred_fallthru
      _
    %v65 = vld [vmem:[#allocation5] sm:$0xff]
    %v66 = vld [vmem:[#allocation5 + $0x8] sm:$0xff]
    %v67 = vld [vmem:[#allocation5 + $0x10] sm:$0xff]
    %v68 = vld [vmem:[#allocation5 + $0x18] sm:$0xff]
    %v69 = vld [vmem:[#allocation5 + $0x20] sm:$0xff]
    %v70 = vld [vmem:[#allocation5 + $0x28] sm:$0xff]
    %v71 = vld [vmem:[#allocation5 + $0x30] sm:$0xff]
    %v72 = vld [vmem:[#allocation5 + $0x38] sm:$0xff]
    %v73 = vld [vmem:[#allocation5 + $0x40] sm:$0xff]
    %v74 = vld [vmem:[#allocation5 + $0x48] sm:$0xff]
    %v75 = vld [vmem:[#allocation5 + $0x50] sm:$0xff]
    %v76 = vld [vmem:[#allocation5 + $0x58] sm:$0xff]
    %v77 = vld [vmem:[#allocation5 + $0x60] sm:$0xff]
    %v78 = vld [vmem:[#allocation5 + $0x68] sm:$0xff]
    %v79 = vld [vmem:[#allocation5 + $0x70] sm:$0xff]
    %v80 = vld [vmem:[#allocation5 + $0x78] sm:$0xff]
    %v81 = vld [vmem:[#allocation2] sm:$0xff]
    %v82 = vld [vmem:[#allocation2 + $0x8] sm:$0xff]
    %v83 = vld [vmem:[#allocation2 + $0x10] sm:$0xff]
    %v84 = vld [vmem:[#allocation2 + $0x18] sm:$0xff]
    %v85 = vld [vmem:[#allocation2 + $0x20] sm:$0xff]
    %v86 = vld [vmem:[#allocation2 + $0x28] sm:$0xff]
    %v87 = vld [vmem:[#allocation2 + $0x30] sm:$0xff]
    %v88 = vld [vmem:[#allocation2 + $0x38] sm:$0xff]
    %v89 = vld [vmem:[#allocation2 + $0x40] sm:$0xff]
    %v90 = vld [vmem:[#allocation2 + $0x48] sm:$0xff]
    %v91 = vld [vmem:[#allocation2 + $0x50] sm:$0xff]
    %v92 = vld [vmem:[#allocation2 + $0x58] sm:$0xff]
    %v93 = vld [vmem:[#allocation2 + $0x60] sm:$0xff]
    %v94 = vld [vmem:[#allocation2 + $0x68] sm:$0xff]
    %v95 = vld [vmem:[#allocation2 + $0x70] sm:$0xff]
    %v96 = vld [vmem:[#allocation2 + $0x78] sm:$0xff]
    %97 = vmatprep.subr.mxu0 0.0
    %98 = vmatpush1.msra.mxu0 %v81
    %99 = vmatprep.subr.mxu0 0.0
    %100 = vmatpush1.msra.mxu0 %v82
    %101 = vmatprep.subr.mxu0 0.0
    %102 = vmatpush1.msra.mxu0 %v83
    %103 = vmatprep.subr.mxu0 0.0
    %104 = vmatpush1.msra.mxu0 %v84
    %105 = vmatprep.subr.mxu0 0.0
    %106 = vmatpush1.msra.mxu0 %v85
    %107 = vmatprep.subr.mxu0 0.0
    %108 = vmatpush1.msra.mxu0 %v86
    %109 = vmatprep.subr.mxu0 0.0
    %110 = vmatpush1.msra.mxu0 %v87
    %111 = vmatprep.subr.mxu0 0.0
    %112 = vmatpush1.msra.mxu0 %v88
    %113 = vmatprep.subr.mxu0 0.0
    %114 = vmatpush1.msra.mxu0 %v89
    %115 = vmatprep.subr.mxu0 0.0
    %116 = vmatpush1.msra.mxu0 %v90
    %117 = vmatprep.subr.mxu0 0.0
    %118 = vmatpush1.msra.mxu0 %v91
    %119 = vmatprep.subr.mxu0 0.0
    %120 = vmatpush1.msra.mxu0 %v92
    %121 = vmatprep.subr.mxu0 0.0
    %122 = vmatpush1.msra.mxu0 %v93
    %123 = vmatprep.subr.mxu0 0.0
    %124 = vmatpush1.msra.mxu0 %v94
    %125 = vmatprep.subr.mxu0 0.0
    %126 = vmatpush1.msra.mxu0 %v95
    %127 = vmatprep.subr.mxu0 0.0
    %128 = vmatpush1.msra.mxu0 %v96
    %129 = vmatprep.subr.mxu0 0.0
    %130 = vmatpush1.msra.mxu0 0.0
    %131 = vmatprep.subr.mxu0 0.0
    %132 = vmatpush1.msra.mxu0 0.0
    %133 = vmatprep.subr.mxu0 0.0
    %134 = vmatpush1.msra.mxu0 0.0
    %135 = vmatprep.subr.mxu0 0.0
    %136 = vmatpush1.msra.mxu0 0.0
    %137 = vmatprep.subr.mxu0 0.0
    %138 = vmatpush1.msra.mxu0 0.0
    %139 = vmatprep.subr.mxu0 0.0
    %140 = vmatpush1.msra.mxu0 0.0
    %141 = vmatprep.subr.mxu0 0.0
    %142 = vmatpush1.msra.mxu0 0.0
    %143 = vmatprep.subr.mxu0 0.0
    %144 = vmatpush1.msra.mxu0 0.0
    %145 = vmatprep.subr.mxu0 0.0
    %146 = vmatpush1.msra.mxu0 0.0
    %147 = vmatprep.subr.mxu0 0.0
    %148 = vmatpush1.msra.mxu0 0.0
    %149 = vmatprep.subr.mxu0 0.0
    %150 = vmatpush1.msra.mxu0 0.0
    %151 = vmatprep.subr.mxu0 0.0
    %152 = vmatpush1.msra.mxu0 0.0
    %153 = vmatprep.subr.mxu0 0.0
    %154 = vmatpush1.msra.mxu0 0.0
    %155 = vmatprep.subr.mxu0 0.0
    %156 = vmatpush1.msra.mxu0 0.0
    %157 = vmatprep.subr.mxu0 0.0
    %158 = vmatpush1.msra.mxu0 0.0
    %159 = vmatprep.subr.mxu0 0.0
    %160 = vmatpush1.msra.mxu0 0.0
    %161 = vmatprep.mubr.f32.mxu0 0.0
    %162 = vmatmul.mubr.f32.gmra.mrb[0].mxu0 %v65
    %v163 = vpop.f32.mrb[0].mxu0
    %v164 = vadd.f32 0.0, %v163
    %v165 = vpop.f32.mrb[0].mxu0
    %166 = vmatprep.mubr.f32.mxu0 0.0
    %167 = vmatmul.mubr.f32.gmra.mrb[0].mxu0 %v66
    %v168 = vpop.f32.mrb[0].mxu0
    %v169 = vadd.f32 0.0, %v168
    %v170 = vpop.f32.mrb[0].mxu0
    %171 = vmatprep.mubr.f32.mxu0 0.0
    %172 = vmatmul.mubr.f32.gmra.mrb[0].mxu0 %v67
    %v173 = vpop.f32.mrb[0].mxu0
    %v174 = vadd.f32 0.0, %v173
    %v175 = vpop.f32.mrb[0].mxu0
    %176 = vmatprep.mubr.f32.mxu0 0.0
    %177 = vmatmul.mubr.f32.gmra.mrb[0].mxu0 %v68
    %v178 = vpop.f32.mrb[0].mxu0
    %v179 = vadd.f32 0.0, %v178
    %v180 = vpop.f32.mrb[0].mxu0
    %181 = vmatprep.mubr.f32.mxu0 0.0
    %182 = vmatmul.mubr.f32.gmra.mrb[0].mxu0 %v69
    %v183 = vpop.f32.mrb[0].mxu0
    %v184 = vadd.f32 0.0, %v183
    %v185 = vpop.f32.mrb[0].mxu0
    %186 = vmatprep.mubr.f32.mxu0 0.0
    %187 = vmatmul.mubr.f32.gmra.mrb[0].mxu0 %v70
    %v188 = vpop.f32.mrb[0].mxu0
    %v189 = vadd.f32 0.0, %v188
    %v190 = vpop.f32.mrb[0].mxu0
    %191 = vmatprep.mubr.f32.mxu0 0.0
    %192 = vmatmul.mubr.f32.gmra.mrb[0].mxu0 %v71
    %v193 = vpop.f32.mrb[0].mxu0
    %v194 = vadd.f32 0.0, %v193
    %v195 = vpop.f32.mrb[0].mxu0
    %196 = vmatprep.mubr.f32.mxu0 0.0
    %197 = vmatmul.mubr.f32.gmra.mrb[0].mxu0 %v72
    %v198 = vpop.f32.mrb[0].mxu0
    %v199 = vadd.f32 0.0, %v198
    %v200 = vpop.f32.mrb[0].mxu0
    %201 = vmatprep.mubr.f32.mxu0 0.0
    %202 = vmatmul.mubr.f32.gmra.mrb[0].mxu0 %v73
    %v203 = vpop.f32.mrb[0].mxu0
    %v204 = vadd.f32 0.0, %v203
    %v205 = vpop.f32.mrb[0].mxu0
    %206 = vmatprep.mubr.f32.mxu0 0.0
    %207 = vmatmul.mubr.f32.gmra.mrb[0].mxu0 %v74
    %v208 = vpop.f32.mrb[0].mxu0
    %v209 = vadd.f32 0.0, %v208
    %v210 = vpop.f32.mrb[0].mxu0
    %211 = vmatprep.mubr.f32.mxu0 0.0
    %212 = vmatmul.mubr.f32.gmra.mrb[0].mxu0 %v75
    %v213 = vpop.f32.mrb[0].mxu0
    %v214 = vadd.f32 0.0, %v213
    %v215 = vpop.f32.mrb[0].mxu0
    %216 = vmatprep.mubr.f32.mxu0 0.0
    %217 = vmatmul.mubr.f32.gmra.mrb[0].mxu0 %v76
    %v218 = vpop.f32.mrb[0].mxu0
    %v219 = vadd.f32 0.0, %v218
    %v220 = vpop.f32.mrb[0].mxu0
    %221 = vmatprep.mubr.f32.mxu0 0.0
    %222 = vmatmul.mubr.f32.gmra.mrb[0].mxu0 %v77
    %v223 = vpop.f32.mrb[0].mxu0
    %v224 = vadd.f32 0.0, %v223
    %v225 = vpop.f32.mrb[0].mxu0
    %226 = vmatprep.mubr.f32.mxu0 0.0
    %227 = vmatmul.mubr.f32.gmra.mrb[0].mxu0 %v78
    %v228 = vpop.f32.mrb[0].mxu0
    %v229 = vadd.f32 0.0, %v228
    %v230 = vpop.f32.mrb[0].mxu0
    %231 = vmatprep.mubr.f32.mxu0 0.0
    %232 = vmatmul.mubr.f32.gmra.mrb[0].mxu0 %v79
    %v233 = vpop.f32.mrb[0].mxu0
    %v234 = vadd.f32 0.0, %v233
    %v235 = vpop.f32.mrb[0].mxu0
    %236 = vmatprep.mubr.f32.mxu0 0.0
    %237 = vmatmul.mubr.f32.gmra.mrb[0].mxu0 %v80
    %v238 = vpop.f32.mrb[0].mxu0
    %v239 = vadd.f32 0.0, %v238
    %v240 = vpop.f32.mrb[0].mxu0
    %241 = vdwg.mxu0
    %v242 = vld [vmem:[#allocation7] sm:$0xff]
    %v243 = vld [vmem:[#allocation7 + $0x8] sm:$0xff]
    %v244 = vld [vmem:[#allocation7 + $0x10] sm:$0xff]
    %v245 = vld [vmem:[#allocation7 + $0x18] sm:$0xff]
    %v246 = vld [vmem:[#allocation7 + $0x20] sm:$0xff]
    %v247 = vld [vmem:[#allocation7 + $0x28] sm:$0xff]
    %v248 = vld [vmem:[#allocation7 + $0x30] sm:$0xff]
    %v249 = vld [vmem:[#allocation7 + $0x38] sm:$0xff]
    %v250 = vld [vmem:[#allocation7 + $0x40] sm:$0xff]
    %v251 = vld [vmem:[#allocation7 + $0x48] sm:$0xff]
    %v252 = vld [vmem:[#allocation7 + $0x50] sm:$0xff]
    %v253 = vld [vmem:[#allocation7 + $0x58] sm:$0xff]
    %v254 = vld [vmem:[#allocation7 + $0x60] sm:$0xff]
    %v255 = vld [vmem:[#allocation7 + $0x68] sm:$0xff]
    %v256 = vld [vmem:[#allocation7 + $0x70] sm:$0xff]
    %v257 = vld [vmem:[#allocation7 + $0x78] sm:$0xff]
    %v258 = vld [vmem:[%s3] sm:$0x1]
    %v260 = vlaneseq
    %v261 = vshrl.u32 %v260, 7
    %v262 = vsub.s32 0, %v261
    %v263 = vrot.slane %v258, %v262
    %265 = vmatprep.subr.mxu0 0.0
    %266 = vmatpush1.msra.mxu0 %v242
    %267 = vmatprep.subr.mxu0 0.0
    %268 = vmatpush1.msra.mxu0 %v243
    %269 = vmatprep.subr.mxu0 0.0
    %270 = vmatpush1.msra.mxu0 %v244
    %271 = vmatprep.subr.mxu0 0.0
    %272 = vmatpush1.msra.mxu0 %v245
    %273 = vmatprep.subr.mxu0 0.0
    %274 = vmatpush1.msra.mxu0 %v246
    %275 = vmatprep.subr.mxu0 0.0
    %276 = vmatpush1.msra.mxu0 %v247
    %277 = vmatprep.subr.mxu0 0.0
    %278 = vmatpush1.msra.mxu0 %v248
    %279 = vmatprep.subr.mxu0 0.0
    %280 = vmatpush1.msra.mxu0 %v249
    %281 = vmatprep.subr.mxu0 0.0
    %282 = vmatpush1.msra.mxu0 %v250
    %283 = vmatprep.subr.mxu0 0.0
    %284 = vmatpush1.msra.mxu0 %v251
    %285 = vmatprep.subr.mxu0 0.0
    %286 = vmatpush1.msra.mxu0 %v252
    %287 = vmatprep.subr.mxu0 0.0
    %288 = vmatpush1.msra.mxu0 %v253
    %289 = vmatprep.subr.mxu0 0.0
    %290 = vmatpush1.msra.mxu0 %v254
    %291 = vmatprep.subr.mxu0 0.0
    %292 = vmatpush1.msra.mxu0 %v255
    %293 = vmatprep.subr.mxu0 0.0
    %294 = vmatpush1.msra.mxu0 %v256
    %295 = vmatprep.subr.mxu0 0.0
    %296 = vmatpush1.msra.mxu0 %v257
    %297 = vmatprep.subr.mxu0 0.0
    %298 = vmatpush1.msra.mxu0 0.0
    %299 = vmatprep.subr.mxu0 0.0
    %300 = vmatpush1.msra.mxu0 0.0
    %301 = vmatprep.subr.mxu0 0.0
    %302 = vmatpush1.msra.mxu0 0.0
    %303 = vmatprep.subr.mxu0 0.0
    %304 = vmatpush1.msra.mxu0 0.0
    %305 = vmatprep.subr.mxu0 0.0
    %306 = vmatpush1.msra.mxu0 0.0
    %307 = vmatprep.subr.mxu0 0.0
    %308 = vmatpush1.msra.mxu0 0.0
    %309 = vmatprep.subr.mxu0 0.0
    %310 = vmatpush1.msra.mxu0 0.0
    %311 = vmatprep.subr.mxu0 0.0
    %312 = vmatpush1.msra.mxu0 0.0
    %313 = vmatprep.subr.mxu0 0.0
    %314 = vmatpush1.msra.mxu0 0.0
    %315 = vmatprep.subr.mxu0 0.0
    %316 = vmatpush1.msra.mxu0 0.0
    %317 = vmatprep.subr.mxu0 0.0
    %318 = vmatpush1.msra.mxu0 0.0
    %319 = vmatprep.subr.mxu0 0.0
    %320 = vmatpush1.msra.mxu0 0.0
    %321 = vmatprep.subr.mxu0 0.0
    %322 = vmatpush1.msra.mxu0 0.0
    %323 = vmatprep.subr.mxu0 0.0
    %324 = vmatpush1.msra.mxu0 0.0
    %325 = vmatprep.subr.mxu0 0.0
    %326 = vmatpush1.msra.mxu0 0.0
    %327 = vmatprep.subr.mxu0 0.0
    %328 = vmatpush1.msra.mxu0 0.0
    %329 = vmatprep.mubr.f32.mxu0 0.0
    %330 = vmatmul.mubr.f32.gmra.mrb[0].mxu0 %v164
    %v331 = vpop.f32.mrb[0].mxu0
    %v332 = vadd.f32 %v263, %v331
    %v333 = vpop.f32.mrb[0].mxu0
    %334 = vmatprep.mubr.f32.mxu0 0.0
    %335 = vmatmul.mubr.f32.gmra.mrb[0].mxu0 %v169
    %v336 = vpop.f32.mrb[0].mxu0
    %v337 = vadd.f32 %v263, %v336
    %v338 = vpop.f32.mrb[0].mxu0
    %339 = vmatprep.mubr.f32.mxu0 0.0
    %340 = vmatmul.mubr.f32.gmra.mrb[0].mxu0 %v174
    %v341 = vpop.f32.mrb[0].mxu0
    %v342 = vadd.f32 %v263, %v341
    %v343 = vpop.f32.mrb[0].mxu0
    %344 = vmatprep.mubr.f32.mxu0 0.0
    %345 = vmatmul.mubr.f32.gmra.mrb[0].mxu0 %v179
    %v346 = vpop.f32.mrb[0].mxu0
    %v347 = vadd.f32 %v263, %v346
    %v348 = vpop.f32.mrb[0].mxu0
    %349 = vmatprep.mubr.f32.mxu0 0.0
    %350 = vmatmul.mubr.f32.gmra.mrb[0].mxu0 %v184
    %v351 = vpop.f32.mrb[0].mxu0
    %v352 = vadd.f32 %v263, %v351
    %v353 = vpop.f32.mrb[0].mxu0
    %354 = vmatprep.mubr.f32.mxu0 0.0
    %355 = vmatmul.mubr.f32.gmra.mrb[0].mxu0 %v189
    %v356 = vpop.f32.mrb[0].mxu0
    %v357 = vadd.f32 %v263, %v356
    %v358 = vpop.f32.mrb[0].mxu0
    %359 = vmatprep.mubr.f32.mxu0 0.0
    %360 = vmatmul.mubr.f32.gmra.mrb[0].mxu0 %v194
    %v361 = vpop.f32.mrb[0].mxu0
    %v362 = vadd.f32 %v263, %v361
    %v363 = vpop.f32.mrb[0].mxu0
    %364 = vmatprep.mubr.f32.mxu0 0.0
    %365 = vmatmul.mubr.f32.gmra.mrb[0].mxu0 %v199
    %v366 = vpop.f32.mrb[0].mxu0
    %v367 = vadd.f32 %v263, %v366
    %v368 = vpop.f32.mrb[0].mxu0
    %369 = vmatprep.mubr.f32.mxu0 0.0
    %370 = vmatmul.mubr.f32.gmra.mrb[0].mxu0 %v204
    %v371 = vpop.f32.mrb[0].mxu0
    %v372 = vadd.f32 %v263, %v371
    %v373 = vpop.f32.mrb[0].mxu0
    %374 = vmatprep.mubr.f32.mxu0 0.0
    %375 = vmatmul.mubr.f32.gmra.mrb[0].mxu0 %v209
    %v376 = vpop.f32.mrb[0].mxu0
    %v377 = vadd.f32 %v263, %v376
    %v378 = vpop.f32.mrb[0].mxu0
    %379 = vmatprep.mubr.f32.mxu0 0.0
    %380 = vmatmul.mubr.f32.gmra.mrb[0].mxu0 %v214
    %v381 = vpop.f32.mrb[0].mxu0
    %v382 = vadd.f32 %v263, %v381
    %v383 = vpop.f32.mrb[0].mxu0
    %384 = vmatprep.mubr.f32.mxu0 0.0
    %385 = vmatmul.mubr.f32.gmra.mrb[0].mxu0 %v219
    %v386 = vpop.f32.mrb[0].mxu0
    %v387 = vadd.f32 %v263, %v386
    %v388 = vpop.f32.mrb[0].mxu0
    %389 = vmatprep.mubr.f32.mxu0 0.0
    %390 = vmatmul.mubr.f32.gmra.mrb[0].mxu0 %v224
    %v391 = vpop.f32.mrb[0].mxu0
    %v392 = vadd.f32 %v263, %v391
    %v393 = vpop.f32.mrb[0].mxu0
    %394 = vmatprep.mubr.f32.mxu0 0.0
    %395 = vmatmul.mubr.f32.gmra.mrb[0].mxu0 %v229
    %v396 = vpop.f32.mrb[0].mxu0
    %v397 = vadd.f32 %v263, %v396
    %v398 = vpop.f32.mrb[0].mxu0
    %399 = vmatprep.mubr.f32.mxu0 0.0
    %400 = vmatmul.mubr.f32.gmra.mrb[0].mxu0 %v234
    %v401 = vpop.f32.mrb[0].mxu0
    %v402 = vadd.f32 %v263, %v401
    %v403 = vpop.f32.mrb[0].mxu0
    %404 = vmatprep.mubr.f32.mxu0 0.0
    %405 = vmatmul.mubr.f32.gmra.mrb[0].mxu0 %v239
    %v406 = vpop.f32.mrb[0].mxu0
    %v407 = vadd.f32 %v263, %v406
    %v408 = vpop.f32.mrb[0].mxu0
    %409 = vdwg.mxu0
    %v410 = vmax.f32 %v332, 0.0
    %v411 = vmax.f32 %v337, 0.0
    %v412 = vmax.f32 %v342, 0.0
    %v413 = vmax.f32 %v347, 0.0
    %v414 = vmax.f32 %v352, 0.0
    %v415 = vmax.f32 %v357, 0.0
    %v416 = vmax.f32 %v362, 0.0
    %v417 = vmax.f32 %v367, 0.0
    %v418 = vmax.f32 %v372, 0.0
    %v419 = vmax.f32 %v377, 0.0
    %v420 = vmax.f32 %v382, 0.0
    %v421 = vmax.f32 %v387, 0.0
    %v422 = vmax.f32 %v392, 0.0
    %v423 = vmax.f32 %v397, 0.0
    %v424 = vmax.f32 %v402, 0.0
    %v425 = vmax.f32 %v407, 0.0
    %426 = vadd.xlane.f32.xlu0 %v410
    %v427 = vpop.xlane.xlu0 %426
    %428 = vadd.xlane.f32.xlu0 %v411
    %v429 = vpop.xlane.xlu0 %428
    %430 = vadd.xlane.f32.xlu0 %v412
    %v431 = vpop.xlane.xlu0 %430
    %432 = vadd.xlane.f32.xlu0 %v413
    %v433 = vpop.xlane.xlu0 %432
    %434 = vadd.xlane.f32.xlu0 %v414
    %v435 = vpop.xlane.xlu0 %434
    %436 = vadd.xlane.f32.xlu0 %v415
    %v437 = vpop.xlane.xlu0 %436
    %438 = vadd.xlane.f32.xlu0 %v416
    %v439 = vpop.xlane.xlu0 %438
    %440 = vadd.xlane.f32.xlu0 %v417
    %v441 = vpop.xlane.xlu0 %440
    %442 = vadd.xlane.f32.xlu0 %v418
    %v443 = vpop.xlane.xlu0 %442
    %444 = vadd.xlane.f32.xlu0 %v419
    %v445 = vpop.xlane.xlu0 %444
    %446 = vadd.xlane.f32.xlu0 %v420
    %v447 = vpop.xlane.xlu0 %446
    %448 = vadd.xlane.f32.xlu0 %v421
    %v449 = vpop.xlane.xlu0 %448
    %450 = vadd.xlane.f32.xlu0 %v422
    %v451 = vpop.xlane.xlu0 %450
    %452 = vadd.xlane.f32.xlu0 %v423
    %v453 = vpop.xlane.xlu0 %452
    %454 = vadd.xlane.f32.xlu0 %v424
    %v455 = vpop.xlane.xlu0 %454
    %456 = vadd.xlane.f32.xlu0 %v425
    %v457 = vpop.xlane.xlu0 %456
    %v458 = vld [vmem:[%s4] sm:$0x1]
    %v460 = vlaneseq
    %v461 = vshrl.u32 %v460, 7
    %v462 = vsub.s32 0, %v461
    %v463 = vrot.slane %v458, %v462
    %v465 = vmul.f32 %v427, %v463
    %v466 = vmul.f32 %v429, %v463
    %v467 = vmul.f32 %v431, %v463
    %v468 = vmul.f32 %v433, %v463
    %v469 = vmul.f32 %v435, %v463
    %v470 = vmul.f32 %v437, %v463
    %v471 = vmul.f32 %v439, %v463
    %v472 = vmul.f32 %v441, %v463
    %v473 = vmul.f32 %v443, %v463
    %v474 = vmul.f32 %v445, %v463
    %v475 = vmul.f32 %v447, %v463
    %v476 = vmul.f32 %v449, %v463
    %v477 = vmul.f32 %v451, %v463
    %v478 = vmul.f32 %v453, %v463
    %v479 = vmul.f32 %v455, %v463
    %v480 = vmul.f32 %v457, %v463
    %v481 = vld [vmem:[%s5] sm:$0x1]
    %v483 = vlaneseq
    %v484 = vshrl.u32 %v483, 7
    %v485 = vsub.s32 0, %v484
    %v486 = vrot.slane %v481, %v485
    %v488 = vadd.f32 %v465, %v486
    %v489 = vadd.f32 %v466, %v486
    %v490 = vadd.f32 %v467, %v486
    %v491 = vadd.f32 %v468, %v486
    %v492 = vadd.f32 %v469, %v486
    %v493 = vadd.f32 %v470, %v486
    %v494 = vadd.f32 %v471, %v486
    %v495 = vadd.f32 %v472, %v486
    %v496 = vadd.f32 %v473, %v486
    %v497 = vadd.f32 %v474, %v486
    %v498 = vadd.f32 %v475, %v486
    %v499 = vadd.f32 %v476, %v486
    %v500 = vadd.f32 %v477, %v486
    %v501 = vadd.f32 %v478, %v486
    %v502 = vadd.f32 %v479, %v486
    %v503 = vadd.f32 %v480, %v486
    %v504 = vlaneseq
    %v505 = vand.u32 %v504, 127
    %vm506 = vcmp.lt.s32.totalorder %v505, 10
    %v507 = vsel %vm506, %v488, -inf
    %v508 = vsel %vm506, %v489, -inf
    %v509 = vsel %vm506, %v490, -inf
    %v510 = vsel %vm506, %v491, -inf
    %v511 = vsel %vm506, %v492, -inf
    %v512 = vsel %vm506, %v493, -inf
    %v513 = vsel %vm506, %v494, -inf
    %v514 = vsel %vm506, %v495, -inf
    %v515 = vsel %vm506, %v496, -inf
    %v516 = vsel %vm506, %v497, -inf
    %v517 = vsel %vm506, %v498, -inf
    %v518 = vsel %vm506, %v499, -inf
    %v519 = vsel %vm506, %v500, -inf
    %v520 = vsel %vm506, %v501, -inf
    %v521 = vsel %vm506, %v502, -inf
    %v522 = vsel %vm506, %v503, -inf
    %523 = vmax.xlane.f32.xlu0 %v507
    %v524 = vpop.xlane.xlu0 %523
    %525 = vmax.xlane.f32.xlu0 %v508
    %v526 = vpop.xlane.xlu0 %525
    %527 = vmax.xlane.f32.xlu0 %v509
    %v528 = vpop.xlane.xlu0 %527
    %529 = vmax.xlane.f32.xlu0 %v510
    %v530 = vpop.xlane.xlu0 %529
    %531 = vmax.xlane.f32.xlu0 %v511
    %v532 = vpop.xlane.xlu0 %531
    %533 = vmax.xlane.f32.xlu0 %v512
    %v534 = vpop.xlane.xlu0 %533
    %535 = vmax.xlane.f32.xlu0 %v513
    %v536 = vpop.xlane.xlu0 %535
    %537 = vmax.xlane.f32.xlu0 %v514
    %v538 = vpop.xlane.xlu0 %537
    %539 = vmax.xlane.f32.xlu0 %v515
    %v540 = vpop.xlane.xlu0 %539
    %541 = vmax.xlane.f32.xlu0 %v516
    %v542 = vpop.xlane.xlu0 %541
    %543 = vmax.xlane.f32.xlu0 %v517
    %v544 = vpop.xlane.xlu0 %543
    %545 = vmax.xlane.f32.xlu0 %v518
    %v546 = vpop.xlane.xlu0 %545
    %547 = vmax.xlane.f32.xlu0 %v519
    %v548 = vpop.xlane.xlu0 %547
    %549 = vmax.xlane.f32.xlu0 %v520
    %v550 = vpop.xlane.xlu0 %549
    %551 = vmax.xlane.f32.xlu0 %v521
    %v552 = vpop.xlane.xlu0 %551
    %553 = vmax.xlane.f32.xlu0 %v522
    %v554 = vpop.xlane.xlu0 %553
    %v555 = vsub.f32 %v507, %v524
    %v556 = vsub.f32 %v508, %v526
    %v557 = vsub.f32 %v509, %v528
    %v558 = vsub.f32 %v510, %v530
    %v559 = vsub.f32 %v511, %v532
    %v560 = vsub.f32 %v512, %v534
    %v561 = vsub.f32 %v513, %v536
    %v562 = vsub.f32 %v514, %v538
    %v563 = vsub.f32 %v515, %v540
    %v564 = vsub.f32 %v516, %v542
    %v565 = vsub.f32 %v517, %v544
    %v566 = vsub.f32 %v518, %v546
    %v567 = vsub.f32 %v519, %v548
    %v568 = vsub.f32 %v520, %v550
    %v569 = vsub.f32 %v521, %v552
    %v570 = vsub.f32 %v522, %v554
    %v571 = vmul.f32 %v555, 1.442695
    %v572 = vpow.pop %v571
    %v573 = vmul.f32 %v556, 1.442695
    %v574 = vpow.pop %v573
    %v575 = vmul.f32 %v557, 1.442695
    %v576 = vpow.pop %v575
    %v577 = vmul.f32 %v558, 1.442695
    %v578 = vpow.pop %v577
    %v579 = vmul.f32 %v559, 1.442695
    %v580 = vpow.pop %v579
    %v581 = vmul.f32 %v560, 1.442695
    %v582 = vpow.pop %v581
    %v583 = vmul.f32 %v561, 1.442695
    %v584 = vpow.pop %v583
    %v585 = vmul.f32 %v562, 1.442695
    %v586 = vpow.pop %v585
    %v587 = vmul.f32 %v563, 1.442695
    %v588 = vpow.pop %v587
    %v589 = vmul.f32 %v564, 1.442695
    %v590 = vpow.pop %v589
    %v591 = vmul.f32 %v565, 1.442695
    %v592 = vpow.pop %v591
    %v593 = vmul.f32 %v566, 1.442695
    %v594 = vpow.pop %v593
    %v595 = vmul.f32 %v567, 1.442695
    %v596 = vpow.pop %v595
    %v597 = vmul.f32 %v568, 1.442695
    %v598 = vpow.pop %v597
    %v599 = vmul.f32 %v569, 1.442695
    %v600 = vpow.pop %v599
    %v601 = vmul.f32 %v570, 1.442695
    %v602 = vpow.pop %v601
    %603 = vadd.xlane.f32.xlu0 %v572
    %v604 = vpop.xlane.xlu0 %603
    %605 = vadd.xlane.f32.xlu0 %v574
    %v606 = vpop.xlane.xlu0 %605
    %607 = vadd.xlane.f32.xlu0 %v576
    %v608 = vpop.xlane.xlu0 %607
    %609 = vadd.xlane.f32.xlu0 %v578
    %v610 = vpop.xlane.xlu0 %609
    %611 = vadd.xlane.f32.xlu0 %v580
    %v612 = vpop.xlane.xlu0 %611
    %613 = vadd.xlane.f32.xlu0 %v582
    %v614 = vpop.xlane.xlu0 %613
    %615 = vadd.xlane.f32.xlu0 %v584
    %v616 = vpop.xlane.xlu0 %615
    %617 = vadd.xlane.f32.xlu0 %v586
    %v618 = vpop.xlane.xlu0 %617
    %619 = vadd.xlane.f32.xlu0 %v588
    %v620 = vpop.xlane.xlu0 %619
    %621 = vadd.xlane.f32.xlu0 %v590
    %v622 = vpop.xlane.xlu0 %621
    %623 = vadd.xlane.f32.xlu0 %v592
    %v624 = vpop.xlane.xlu0 %623
    %625 = vadd.xlane.f32.xlu0 %v594
    %v626 = vpop.xlane.xlu0 %625
    %627 = vadd.xlane.f32.xlu0 %v596
    %v628 = vpop.xlane.xlu0 %627
    %629 = vadd.xlane.f32.xlu0 %v598
    %v630 = vpop.xlane.xlu0 %629
    %631 = vadd.xlane.f32.xlu0 %v600
    %v632 = vpop.xlane.xlu0 %631
    %633 = vadd.xlane.f32.xlu0 %v602
    %v634 = vpop.xlane.xlu0 %633
    %v635 = vlog2.pop %v604
    %v636 = vmul.f32 %v635, 0.6931472
    %v637 = vlog2.pop %v606
    %v638 = vmul.f32 %v637, 0.6931472
    %v639 = vlog2.pop %v608
    %v640 = vmul.f32 %v639, 0.6931472
    %v641 = vlog2.pop %v610
    %v642 = vmul.f32 %v641, 0.6931472
    %v643 = vlog2.pop %v612
    %v644 = vmul.f32 %v643, 0.6931472
    %v645 = vlog2.pop %v614
    %v646 = vmul.f32 %v645, 0.6931472
    %v647 = vlog2.pop %v616
    %v648 = vmul.f32 %v647, 0.6931472
    %v649 = vlog2.pop %v618
    %v650 = vmul.f32 %v649, 0.6931472
    %v651 = vlog2.pop %v620
    %v652 = vmul.f32 %v651, 0.6931472
    %v653 = vlog2.pop %v622
    %v654 = vmul.f32 %v653, 0.6931472
    %v655 = vlog2.pop %v624
    %v656 = vmul.f32 %v655, 0.6931472
    %v657 = vlog2.pop %v626
    %v658 = vmul.f32 %v657, 0.6931472
    %v659 = vlog2.pop %v628
    %v660 = vmul.f32 %v659, 0.6931472
    %v661 = vlog2.pop %v630
    %v662 = vmul.f32 %v661, 0.6931472
    %v663 = vlog2.pop %v632
    %v664 = vmul.f32 %v663, 0.6931472
    %v665 = vlog2.pop %v634
    %v666 = vmul.f32 %v665, 0.6931472
    %v667 = vsub.f32 %v555, %v636
    %v668 = vsub.f32 %v556, %v638
    %v669 = vsub.f32 %v557, %v640
    %v670 = vsub.f32 %v558, %v642
    %v671 = vsub.f32 %v559, %v644
    %v672 = vsub.f32 %v560, %v646
    %v673 = vsub.f32 %v561, %v648
    %v674 = vsub.f32 %v562, %v650
    %v675 = vsub.f32 %v563, %v652
    %v676 = vsub.f32 %v564, %v654
    %v677 = vsub.f32 %v565, %v656
    %v678 = vsub.f32 %v566, %v658
    %v679 = vsub.f32 %v567, %v660
    %v680 = vsub.f32 %v568, %v662
    %v681 = vsub.f32 %v569, %v664
    %v682 = vsub.f32 %v570, %v666
    %683 = vst [vmem:[#allocation8] sm:$0xff] %v667
    %684 = vst [vmem:[#allocation8 + $0x8] sm:$0xff] %v668
    %685 = vst [vmem:[#allocation8 + $0x10] sm:$0xff] %v669
    %686 = vst [vmem:[#allocation8 + $0x18] sm:$0xff] %v670
    %687 = vst [vmem:[#allocation8 + $0x20] sm:$0xff] %v671
    %688 = vst [vmem:[#allocation8 + $0x28] sm:$0xff] %v672
    %689 = vst [vmem:[#allocation8 + $0x30] sm:$0xff] %v673
    %690 = vst [vmem:[#allocation8 + $0x38] sm:$0xff] %v674
    %691 = vst [vmem:[#allocation8 + $0x40] sm:$0xff] %v675
    %692 = vst [vmem:[#allocation8 + $0x48] sm:$0xff] %v676
    %693 = vst [vmem:[#allocation8 + $0x50] sm:$0xff] %v677
    %694 = vst [vmem:[#allocation8 + $0x58] sm:$0xff] %v678
    %695 = vst [vmem:[#allocation8 + $0x60] sm:$0xff] %v679
    %696 = vst [vmem:[#allocation8 + $0x68] sm:$0xff] %v680
    %697 = vst [vmem:[#allocation8 + $0x70] sm:$0xff] %v681
    %698 = vst [vmem:[#allocation8 + $0x78] sm:$0xff] %v682
    // Predicated region
    $region38: #{tpu_custom_call.1} parent=1 // pred_check
      _
    $region39: #{tpu_custom_call.1} parent=1 // pred_check_branch
      %700 = sbr.rel (0) target = $region41
    $region40: #{tpu_custom_call.1} parent=1 // pred_region
      %s702 = ssub.s32 2048, 2048
      %703 = vsyncadd [#allocation4], %s702
      %s704 = sshll.u32 [#allocation8], 4
      %s705 = int_to_ptr.vmem [resolvable:$true] %s704
      %710 = dma.vmem_to_hbm [thread:$0]  %s705, 2048, %s6, [#allocation4], 128, 128, 8
    $region41: #{tpu_custom_call.1} parent=1 // pred_fallthru
      _
    // Predicated region
    $region42: #{tpu_custom_call.1} parent=1 // pred_check
      _
    $region43: #{tpu_custom_call.1} parent=1 // pred_check_branch
      %712 = sbr.rel (0) target = $region45
    $region44: #{tpu_custom_call.1} parent=1 // pred_region
      %713 = dma.done [#allocation4], 2048
    $region45: #{tpu_custom_call.1} parent=1 // pred_fallthru
      _
    %714 = vsyncpa [#allocation3], 1
    %715 = vsyncpa [#allocation6], 1
    %716 = vsyncpa [#allocation4], 1

</llo_original>
